<compile_context>
chip_gen: v7x
topology: tpu7x:2x2x1
jax: 0.10.0
libtpu: 0.0.40
codegen_flags: <defaults>
</compile_context>

<pallas_src>
import jax
import jax.numpy as jnp
from jax.experimental import pallas as pl
from jax.experimental.pallas import tpu as pltpu

PI = 3.141592653589793
_MIB = 1024 * 1024


def _cone_negation_kernel(axis_ref, arg_ref, new_axis_ref, new_arg_ref):
    # Upcast to f32 so the pi arithmetic does not degrade bf16 inputs; the op
    # is HBM-bandwidth-bound so the extra VPU work is free.
    axis = axis_ref[...].astype(jnp.float32)
    arg = arg_ref[...].astype(jnp.float32)
    new_axis = jnp.where(axis >= 0.0, axis - PI, axis + PI)
    new_axis_ref[...] = new_axis.astype(new_axis_ref.dtype)
    new_arg_ref[...] = (PI - arg).astype(new_arg_ref.dtype)


def _tpu_info():
    try:
        return pltpu.get_tpu_info()
    except Exception:
        return None


def _vmem_budget():
    """Return (target block bytes, scoped VMEM limit) for this generation."""
    info = _tpu_info()
    vmem = getattr(info, "vmem_capacity_bytes", None) if info is not None else None
    if not isinstance(vmem, int) or vmem <= 0:
        vmem = 128 * _MIB
    if vmem <= 80 * _MIB:                 # v7x-class: 64 MiB VMEM per TC
        return 4 * _MIB, 48 * _MIB        # 8 live buffers x 4 MiB = 32 MiB
    return 6 * _MIB, 64 * _MIB            # v5e / v6e: 128 MiB physical VMEM


def _num_tensorcores():
    info = _tpu_info()
    if info is not None:
        for name in ("num_cores", "tensorcore_count", "num_tensorcores",
                     "cores_per_chip", "num_cores_per_chip"):
            v = getattr(info, name, None)
            if isinstance(v, int) and v > 0:
                return v
    try:
        v = getattr(jax.devices()[0], "num_cores", None)
        if isinstance(v, int) and v > 0:
            return v
    except Exception:
        pass
    return 1


def _choose_2d_view(total, last_dim):
    """Pick a lane-dense (rows, lane) factorization of the flattened tensor."""
    if total >= 128 and total % 128 == 0:
        m = total // 128
        for k in range(min(32, m), 0, -1):   # lane width up to 32*128 = 4096
            if m % k == 0:
                lane = 128 * k
                return total // lane, lane
    # Fallback: keep the model's embedding dim as the lane axis (full-extent
    # last dim is always a legal block shape, just not lane-dense).
    return total // last_dim, last_dim


def _pick_tile_rows(rows, lane, itemsize, target_bytes):
    """Largest sublane tile (dtype packing multiple) within target block bytes."""
    sub = max(8, 32 // max(1, itemsize))     # 8 for f32, 16 for bf16, 32 for int8
    if rows <= sub:
        return rows                          # full extent along rows: always legal
    per_block = target_bytes // (lane * itemsize)
    per_block = max(sub, (per_block // sub) * sub)
    rows_padded = ((rows + sub - 1) // sub) * sub
    return min(per_block, rows_padded)


def cone_negation(axis_embedding: jax.Array, arg_embedding: jax.Array,
                  *, donate_inputs: bool = False):
    assert axis_embedding.shape == arg_embedding.shape
    assert axis_embedding.dtype == arg_embedding.dtype
    orig_shape = axis_embedding.shape
    dtype = axis_embedding.dtype
    total = int(axis_embedding.size)
    last_dim = int(orig_shape[-1]) if axis_embedding.ndim else max(total, 1)

    # Layout glue only: reshapes of contiguous arrays are metadata-only.
    rows, lane = _choose_2d_view(total, last_dim)
    axis2d = axis_embedding.reshape(rows, lane)
    arg2d = arg_embedding.reshape(rows, lane)

    itemsize = jnp.dtype(dtype).itemsize
    target_bytes, vmem_limit = _vmem_budget()
    tile_rows = _pick_tile_rows(rows, lane, itemsize, target_bytes)
    grid = (pl.cdiv(rows, tile_rows),)

    blk = pl.BlockSpec((tile_rows, lane), lambda i: (i, 0))
    aliases = {0: 0, 1: 1} if donate_inputs else {}

    def _call(sem):
        return pl.pallas_call(
            _cone_negation_kernel,
            out_shape=(
                jax.ShapeDtypeStruct((rows, lane), dtype),
                jax.ShapeDtypeStruct((rows, lane), dtype),
            ),
            grid=grid,
            in_specs=[blk, blk],
            out_specs=(blk, blk),
            input_output_aliases=aliases,
            compiler_params=pltpu.CompilerParams(
                dimension_semantics=(sem,),
                vmem_limit_bytes=vmem_limit,
            ),
        )(axis2d, arg2d)

    # On multi-TensorCore chips (v7x) split the row grid across cores; fall
    # back to the generic "parallel" semantics if CORE_PARALLEL is rejected.
    if _num_tensorcores() > 1 and grid[0] >= 2:
        try:
            new_axis2d, new_arg2d = _call(pltpu.CORE_PARALLEL)
        except Exception:
            new_axis2d, new_arg2d = _call("parallel")
    else:
        new_axis2d, new_arg2d = _call("parallel")

    return new_axis2d.reshape(orig_shape), new_arg2d.reshape(orig_shape)


def _reference(axis_embedding, arg_embedding):
    a = axis_embedding.astype(jnp.float32)
    g = arg_embedding.astype(jnp.float32)
    new_axis = jnp.where(a >= 0, a - PI, a + PI)
    new_arg = PI - g
    return new_axis, new_arg


if __name__ == "__main__":
    key = jax.random.PRNGKey(0)
    k1, k2 = jax.random.split(key)

    # Small ConE-like shapes: [batch=2, num_cones=4, dim=256]
    batch, num_cones, dim = 2, 4, 256
    axis_embedding = jax.random.uniform(
        k1, (batch, num_cones, dim), dtype=jnp.float32, minval=-PI, maxval=PI)
    arg_embedding = jax.random.uniform(
        k2, (batch, num_cones, dim), dtype=jnp.float32, minval=0.0, maxval=PI)

    new_axis, new_arg = cone_negation(axis_embedding, arg_embedding)
    jax.block_until_ready((new_axis, new_arg))
    ref_axis, ref_arg = _reference(axis_embedding, arg_embedding)
    assert jnp.allclose(new_axis, ref_axis, atol=1e-6), "axis mismatch"
    assert jnp.allclose(new_arg, ref_arg, atol=1e-6), "arg mismatch"

    # Larger ragged row count: exercises the lane-dense re-view + masked tail.
    rows_big = 4100
    a_big = jax.random.uniform(k1, (rows_big, dim), dtype=jnp.float32,
                               minval=-PI, maxval=PI)
    g_big = jax.random.uniform(k2, (rows_big, dim), dtype=jnp.float32,
                               minval=0.0, maxval=PI)
    na_big, ng_big = cone_negation(a_big, g_big)
    jax.block_until_ready((na_big, ng_big))
    ra_big, rg_big = _reference(a_big, g_big)
    assert jnp.allclose(na_big, ra_big, atol=1e-6), "big axis mismatch"
    assert jnp.allclose(ng_big, rg_big, atol=1e-6), "big arg mismatch"

    # bf16 with an embedding dim that is NOT a multiple of 128: exercises the
    # fallback (rows, dim) view and the in-kernel f32 upcast.
    a_bf = jax.random.uniform(k1, (3, 5, 200), dtype=jnp.bfloat16,
                              minval=-PI, maxval=PI)
    g_bf = jax.random.uniform(k2, (3, 5, 200), dtype=jnp.bfloat16,
                              minval=0.0, maxval=PI)
    na_bf, ng_bf = cone_negation(a_bf, g_bf)
    jax.block_until_ready((na_bf, ng_bf))
    ra_bf, rg_bf = _reference(a_bf, g_bf)
    assert jnp.allclose(na_bf.astype(jnp.float32), ra_bf, atol=2e-2), "bf16 axis mismatch"
    assert jnp.allclose(ng_bf.astype(jnp.float32), rg_bf, atol=2e-2), "bf16 arg mismatch"

    print("KERNEL_OK")
</pallas_src>

<mosaic_0001>
module attributes {stable_mosaic.version = 11 : i64} {
  func.func @_cone_negation_kernel(%arg0: i32, %arg1: memref<1x2048xf32, #tpu.memory_space<vmem>>, %arg2: memref<1x2048xf32, #tpu.memory_space<vmem>>, %arg3: memref<1x2048xf32, #tpu.memory_space<vmem>>, %arg4: memref<1x2048xf32, #tpu.memory_space<vmem>>) attributes {dimension_semantics = [#tpu.dimension_semantics<parallel>], iteration_bounds = array<i64: 1>, scalar_prefetch = 0 : i64, scratch_operands = 0 : i64, tpu.core_type = #tpu.core_type<tc>, window_params = [{transform_indices = @transform_0, window_bounds = array<i64: 1, 2048>}, {transform_indices = @transform_1, window_bounds = array<i64: 1, 2048>}, {transform_indices = @transform_2, window_bounds = array<i64: 1, 2048>}, {transform_indices = @transform_3, window_bounds = array<i64: 1, 2048>}]} {
    %c0 = arith.constant 0 : index
    %c0_0 = arith.constant 0 : index
    %0 = vector.load %arg1[%c0, %c0_0] : memref<1x2048xf32, #tpu.memory_space<vmem>>, vector<1x2048xf32>
    %c0_1 = arith.constant 0 : index
    %c0_2 = arith.constant 0 : index
    %1 = vector.load %arg2[%c0_1, %c0_2] : memref<1x2048xf32, #tpu.memory_space<vmem>>, vector<1x2048xf32>
    %cst = arith.constant 0.000000e+00 : f32
    %2 = vector.broadcast %cst : f32 to vector<1x2048xf32>
    %3 = arith.cmpf oge, %0, %2 : vector<1x2048xf32>
    %cst_3 = arith.constant 3.14159274 : f32
    %4 = vector.broadcast %cst_3 : f32 to vector<1x2048xf32>
    %5 = arith.subf %0, %4 : vector<1x2048xf32>
    %cst_4 = arith.constant 3.14159274 : f32
    %6 = vector.broadcast %cst_4 : f32 to vector<1x2048xf32>
    %7 = arith.addf %0, %6 : vector<1x2048xf32>
    %8 = arith.select %3, %5, %7 : vector<1x2048xi1>, vector<1x2048xf32>
    %c0_5 = arith.constant 0 : index
    %c0_6 = arith.constant 0 : index
    %9 = vector.load %arg3[%c0_5, %c0_6] : memref<1x2048xf32, #tpu.memory_space<vmem>>, vector<1x2048xf32>
    tpu.vector_store %arg3[%c0_5, %c0_6], %8 {strides = array<i32>} : memref<1x2048xf32, #tpu.memory_space<vmem>>, vector<1x2048xf32>,
    %cst_7 = arith.constant 3.14159274 : f32
    %10 = vector.broadcast %cst_7 : f32 to vector<1x2048xf32>
    %11 = arith.subf %10, %1 : vector<1x2048xf32>
    %c0_8 = arith.constant 0 : index
    %c0_9 = arith.constant 0 : index
    %12 = vector.load %arg4[%c0_8, %c0_9] : memref<1x2048xf32, #tpu.memory_space<vmem>>, vector<1x2048xf32>
    tpu.vector_store %arg4[%c0_8, %c0_9], %11 {strides = array<i32>} : memref<1x2048xf32, #tpu.memory_space<vmem>>, vector<1x2048xf32>,
    return
  }
  func.func @transform_0(%arg0: i32) -> (i32, i32) {
    %c0_i32 = arith.constant 0 : i32
    %c0_i32_0 = arith.constant 0 : i32
    return %arg0, %c0_i32 : i32, i32
  }
  func.func @transform_1(%arg0: i32) -> (i32, i32) {
    %c0_i32 = arith.constant 0 : i32
    %c0_i32_0 = arith.constant 0 : i32
    return %arg0, %c0_i32 : i32, i32
  }
  func.func @transform_2(%arg0: i32) -> (i32, i32) {
    %c0_i32 = arith.constant 0 : i32
    %c0_i32_0 = arith.constant 0 : i32
    return %arg0, %c0_i32 : i32, i32
  }
  func.func @transform_3(%arg0: i32) -> (i32, i32) {
    %c0_i32 = arith.constant 0 : i32
    %c0_i32_0 = arith.constant 0 : i32
    return %arg0, %c0_i32 : i32, i32
  }
}

</mosaic_0001>

<llo_original>
// kernel: tpu_custom_call.1
$region0: #{tpu_custom_call.1}
  #allocation0 [shape = 'u32[]', space=smem, size = 0x4, offset = 0x4, fixed_abs, tag = 'smem constant byte address 0x4 - core index']
  #allocation1 [shape = 'u32[144,128]{1,0:T(1,128)}', space=vmem, size = 0x12000, scoped, tag = 'internal scratch']
  %s0 = inlined_call_operand.hbm [shape: f32[1,2048], index: 0, kind: input, shape index: {}]
  %s1 = inlined_call_operand.hbm [shape: f32[1,2048], index: 1, kind: input, shape index: {}]
  %s2 = inlined_call_operand.hbm [shape: f32[1,2048], index: 2, kind: output, shape index: {0}]
  %s3 = inlined_call_operand.hbm [shape: f32[1,2048], index: 3, kind: output, shape index: {1}]
  %4 = xla_tuple %s2, %s3
  %s5 = sld [smem:[#allocation0]]
  $region34: #{tpu_custom_call.1} parent=0
    _
  %s7 = ssub.s32 1, %s5
  %s8 = scalar_select 0, %s7, %s5
  $region1: #{tpu_custom_call.1} parent=0
    #allocation2 [shape = 'u8[8192]{0}', space=vmem, size = 0x2000, scoped, tag = 'input window, operand 0, single buffered']
    #allocation3 [shape = 's32[1]{0}', space=sflag, size = 0x4, scoped, tag = 'scoped memory for tpu_custom_call.1']
    #allocation4 [shape = 's32[1]{0}', space=sflag, size = 0x4, scoped, tag = 'scoped memory for tpu_custom_call.1']
    #allocation5 [shape = 'u8[8192]{0}', space=vmem, size = 0x2000, scoped, tag = 'input window, operand 1, single buffered']
    #allocation6 [shape = 's32[1]{0}', space=sflag, size = 0x4, scoped, tag = 'scoped memory for tpu_custom_call.1']
    #allocation7 [shape = 'u8[8192]{0}', space=vmem, size = 0x2000, scoped, tag = 'output window, operand 0, single buffered']
    #allocation8 [shape = 'u8[8192]{0}', space=vmem, size = 0x2000, scoped, tag = 'output window, operand 1, single buffered']
    #allocation9 [shape = 's32[1]{0}', space=sflag, size = 0x4, scoped, tag = 'scoped memory for tpu_custom_call.1']
    %9 = vsyncpa [#allocation3], 0
    %10 = vsyncpa [#allocation6], 0
    %11 = vsyncpa [#allocation4], 0
    %12 = vsyncpa [#allocation9], 0
    // Predicated region
    $region2: #{tpu_custom_call.1} parent=1 // pred_check
      _
    $region3: #{tpu_custom_call.1} parent=1 // pred_check_branch
      %14 = sbr.rel (0) target = $region5
    $region4: #{tpu_custom_call.1} parent=1 // pred_region
      %s16 = ssub.s32 256, 256
      %17 = vsyncadd [#allocation3], %s16
      %s19 = sshll.u32 [#allocation2], 4
      %s20 = int_to_ptr.vmem [resolvable:$true] %s19
      %22 = dma.hbm_to_vmem [thread:$0]  %s0, 256, %s20, [#allocation3]
    $region5: #{tpu_custom_call.1} parent=1 // pred_fallthru
      _
    // Predicated region
    $region6: #{tpu_custom_call.1} parent=1 // pred_check
      _
    $region7: #{tpu_custom_call.1} parent=1 // pred_check_branch
      %24 = sbr.rel (0) target = $region9
    $region8: #{tpu_custom_call.1} parent=1 // pred_region
      %s26 = ssub.s32 256, 256
      %27 = vsyncadd [#allocation6], %s26
      %s29 = sshll.u32 [#allocation5], 4
      %s30 = int_to_ptr.vmem [resolvable:$true] %s29
      %32 = dma.hbm_to_vmem [thread:$0]  %s1, 256, %s30, [#allocation6]
    $region9: #{tpu_custom_call.1} parent=1 // pred_fallthru
      _
    // Predicated region
    $region10: #{tpu_custom_call.1} parent=1 // pred_check
      _
    $region11: #{tpu_custom_call.1} parent=1 // pred_check_branch
      %34 = sbr.rel (0) target = $region13
    $region12: #{tpu_custom_call.1} parent=1 // pred_region
      %35 = dma.done [#allocation3], 256
    $region13: #{tpu_custom_call.1} parent=1 // pred_fallthru
      _
    // Predicated region
    $region14: #{tpu_custom_call.1} parent=1 // pred_check
      _
    $region15: #{tpu_custom_call.1} parent=1 // pred_check_branch
      %37 = sbr.rel (0) target = $region17
    $region16: #{tpu_custom_call.1} parent=1 // pred_region
      %38 = dma.done [#allocation6], 256
    $region17: #{tpu_custom_call.1} parent=1 // pred_fallthru
      _
    %v39 = vld [vmem:[#allocation2] sm:$0xff]
    %v40 = vld [vmem:[#allocation2 + $0x8] sm:$0xff]
    %v41 = vld [vmem:[#allocation5] sm:$0xff]
    %v42 = vld [vmem:[#allocation5 + $0x8] sm:$0xff]
    %vm43 = vcmp.ge.f32.partialorder %v39, 0.0
    %vm44 = vcmp.ge.f32.partialorder %v40, 0.0
    %v45 = vsub.f32 %v39, 3.1415927
    %v46 = vsub.f32 %v40, 3.1415927
    %v47 = vadd.f32 %v39, 3.1415927
    %v48 = vadd.f32 %v40, 3.1415927
    %v49 = vsel %vm43, %v45, %v47
    %v50 = vsel %vm44, %v46, %v48
    %51 = vst [vmem:[#allocation7] sm:$0xff] %v49
    %52 = vst [vmem:[#allocation7 + $0x8] sm:$0xff] %v50
    %v53 = vsub.f32 3.1415927, %v41
    %v54 = vsub.f32 3.1415927, %v42
    %55 = vst [vmem:[#allocation8] sm:$0xff] %v53
    %56 = vst [vmem:[#allocation8 + $0x8] sm:$0xff] %v54
    // Predicated region
    $region18: #{tpu_custom_call.1} parent=1 // pred_check
      _
    $region19: #{tpu_custom_call.1} parent=1 // pred_check_branch
      %58 = sbr.rel (0) target = $region21
    $region20: #{tpu_custom_call.1} parent=1 // pred_region
      %s60 = ssub.s32 256, 256
      %61 = vsyncadd [#allocation4], %s60
      %s63 = sshll.u32 [#allocation7], 4
      %s64 = int_to_ptr.vmem [resolvable:$true] %s63
      %66 = dma.vmem_to_hbm [thread:$0]  %s64, 256, %s2, [#allocation4]
    $region21: #{tpu_custom_call.1} parent=1 // pred_fallthru
      _
    // Predicated region
    $region22: #{tpu_custom_call.1} parent=1 // pred_check
      _
    $region23: #{tpu_custom_call.1} parent=1 // pred_check_branch
      %68 = sbr.rel (0) target = $region25
    $region24: #{tpu_custom_call.1} parent=1 // pred_region
      %s70 = ssub.s32 256, 256
      %71 = vsyncadd [#allocation9], %s70
      %s73 = sshll.u32 [#allocation8], 4
      %s74 = int_to_ptr.vmem [resolvable:$true] %s73
      %76 = dma.vmem_to_hbm [thread:$0]  %s74, 256, %s3, [#allocation9]
    $region25: #{tpu_custom_call.1} parent=1 // pred_fallthru
      _
    // Predicated region
    $region26: #{tpu_custom_call.1} parent=1 // pred_check
      _
    $region27: #{tpu_custom_call.1} parent=1 // pred_check_branch
      %78 = sbr.rel (0) target = $region29
    $region28: #{tpu_custom_call.1} parent=1 // pred_region
      %79 = dma.done [#allocation4], 256
    $region29: #{tpu_custom_call.1} parent=1 // pred_fallthru
      _
    // Predicated region
    $region30: #{tpu_custom_call.1} parent=1 // pred_check
      _
    $region31: #{tpu_custom_call.1} parent=1 // pred_check_branch
      %81 = sbr.rel (0) target = $region33
    $region32: #{tpu_custom_call.1} parent=1 // pred_region
      %82 = dma.done [#allocation9], 256
    $region33: #{tpu_custom_call.1} parent=1 // pred_fallthru
      _
    %83 = vsyncpa [#allocation3], 1
    %84 = vsyncpa [#allocation6], 1
    %85 = vsyncpa [#allocation4], 1
    %86 = vsyncpa [#allocation9], 1

</llo_original>
